<compile_context>
chip_gen: v5e
topology: v5e:2x2
jax: 0.10.0
libtpu: 0.0.40
codegen_flags: <defaults>
</compile_context>

<pallas_src>
import functools

import jax
import jax.numpy as jnp
from jax.experimental import pallas as pl
from jax.experimental.pallas import tpu as pltpu


# ----------------------------- Pallas kernel --------------------------------

def _fused_gnn_kernel(num_convs, num_edges,
                      src_idx_ref, dst_idx_ref,            # SMEM scalar prefetch
                      a_ref, x_ref, w_ref, b_ref, wl_ref, bl_ref,  # VMEM inputs
                      o_ref,                                # VMEM output [Mp, Op]
                      hs_ref, hd_ref):                      # VMEM scratch [Np, Op]
    # ---- GCN stack: h <- relu(A_hat @ (h @ W_l) + b_l), A_hat resident ----
    # bf16 operands on the MXU, f32 accumulation; elementwise work stays f32.
    a = a_ref[...]                                   # bf16, loaded once, reused L times
    h = x_ref[...]                                   # bf16 on entry
    # TODO(synk): switch to lax.fori_loop(..., unroll=True) + dynamic w_ref[l]
    # indexing once num_convs grows beyond a couple of layers.
    for l in range(num_convs):                       # static unroll (L=2)
        xw = jnp.dot(h.astype(jnp.bfloat16), w_ref[l, :, :],
                     preferred_element_type=jnp.float32)
        agg = jnp.dot(a, xw.astype(jnp.bfloat16),
                      preferred_element_type=jnp.float32)
        h = jnp.maximum(agg + b_ref[l, :, :], 0.0)   # f32 bias-add + ReLU

    # ---- project first, gather second:  concat(h[u],h[v]) @ W_lin ==
    #      (h @ W_top)[u] + (h @ W_bot)[v]  -> gathered rows are O_pad lanes ----
    hb = h.astype(jnp.bfloat16)
    hs_ref[...] = jnp.dot(hb, wl_ref[0, :, :], preferred_element_type=jnp.float32)
    hd_ref[...] = jnp.dot(hb, wl_ref[1, :, :], preferred_element_type=jnp.float32)

    # Row gather driven by scalar-prefetched edge indices; only the real edges.
    # TODO(synk): for large M replace this serial row loop with a bf16 one-hot
    # [tile_M, N] @ hs/hd matmul on the MXU.
    o_ref[...] = jnp.zeros_like(o_ref)               # padded rows well-defined
    for e in range(num_edges):
        o_ref[pl.ds(e, 1), :] = (hs_ref[pl.ds(src_idx_ref[e], 1), :]
                                 + hd_ref[pl.ds(dst_idx_ref[e], 1), :])

    # ---- bias + sigmoid (tanh form -> EUP slot), lane-dense 128-wide store ----
    z = o_ref[...] + bl_ref[...]
    o_ref[...] = 0.5 * (jnp.tanh(0.5 * z) + 1.0)


# ------------------------------ JAX glue -------------------------------------

def _round_up(v, m):
    return (v + m - 1) // m * m


def gcn_norm_dense(edge_index, num_nodes):
    """Dense D^{-1/2}(A+I)D^{-1/2} matching PyG gcn_norm (deg at edge target)."""
    src, dst = edge_index[0], edge_index[1]
    a = jnp.zeros((num_nodes, num_nodes), jnp.float32).at[dst, src].add(1.0)
    a = a + jnp.eye(num_nodes, dtype=jnp.float32)
    deg = a.sum(axis=1)                              # row i <-> target node i
    dinv = jax.lax.rsqrt(deg)
    return a * dinv[:, None] * dinv[None, :]


def node_conv_gnn_forward(params, x, g_edge_index, lg_edge_index, index01):
    del lg_edge_index                                # unused by the reference forward
    n, d = x.shape
    convs = params["convs"]
    num_convs = len(convs)
    hdim = convs[-1][0].shape[1]
    out_dim = params["linear_w"].shape[0]
    m = index01.shape[0]

    LANE, SUB_BF16, SUB_F32 = 128, 16, 8
    n_pad = _round_up(n, SUB_BF16)                   # bf16 sublane tile
    p = _round_up(max(d, hdim), LANE)                # lane-dense feature dim
    o_pad = _round_up(out_dim, LANE)                 # lane-dense output store
    m_pad = _round_up(m, SUB_F32)

    # --- pad / pack operands; matmul operands shipped bf16 (f32 accumulation) ---
    a_hat = gcn_norm_dense(g_edge_index, n)
    a_p = (jnp.zeros((n_pad, n_pad), jnp.float32).at[:n, :n].set(a_hat)
           .astype(jnp.bfloat16))
    x_p = (jnp.zeros((n_pad, p), jnp.float32).at[:n, :d].set(x)
           .astype(jnp.bfloat16))

    w_stack = jnp.zeros((num_convs, p, p), jnp.float32)
    b_stack = jnp.zeros((num_convs, 1, p), jnp.float32)      # bias stays f32
    for l, (w, b) in enumerate(convs):
        w_stack = w_stack.at[l, :w.shape[0], :w.shape[1]].set(w)
        b_stack = b_stack.at[l, 0, :b.shape[0]].set(b)
    w_stack = w_stack.astype(jnp.bfloat16)
    # TODO(synk): ship conv weights unpadded ([L, H, H] bf16) and pad on device
    # to remove the remaining padding blow-up in w_stack DMA bytes.

    wl_t = params["linear_w"].T                      # [2H, O]
    wl_stack = jnp.zeros((2, p, o_pad), jnp.float32)
    wl_stack = wl_stack.at[0, :hdim, :out_dim].set(wl_t[:hdim])
    wl_stack = wl_stack.at[1, :hdim, :out_dim].set(wl_t[hdim:])
    wl_stack = wl_stack.astype(jnp.bfloat16)
    bl_p = jnp.zeros((1, o_pad), jnp.float32).at[0, :out_dim].set(params["linear_b"])

    src, dst = g_edge_index[0], g_edge_index[1]
    src_sel = src[index01].astype(jnp.int32)         # real m edges only
    dst_sel = dst[index01].astype(jnp.int32)

    kernel = functools.partial(_fused_gnn_kernel, num_convs, m)

    one_buf = pl.Buffered(buffer_count=1)            # grid=(1,): no double-buffer
    grid_spec = pltpu.PrefetchScalarGridSpec(
        num_scalar_prefetch=2,                       # src_sel, dst_sel -> SMEM
        grid=(1,),
        in_specs=[
            pl.BlockSpec((n_pad, n_pad), lambda i, s, t: (0, 0),
                         pipeline_mode=one_buf),                      # A_hat (bf16)
            pl.BlockSpec((n_pad, p), lambda i, s, t: (0, 0),
                         pipeline_mode=one_buf),                      # x (bf16)
            pl.BlockSpec((num_convs, p, p), lambda i, s, t: (0, 0, 0),
                         pipeline_mode=one_buf),                      # conv W (bf16)
            pl.BlockSpec((num_convs, 1, p), lambda i, s, t: (0, 0, 0)),  # conv b (f32)
            pl.BlockSpec((2, p, o_pad), lambda i, s, t: (0, 0, 0),
                         pipeline_mode=one_buf),                      # linear W (bf16)
            pl.BlockSpec((1, o_pad), lambda i, s, t: (0, 0)),         # linear b (f32)
        ],
        out_specs=pl.BlockSpec((m_pad, o_pad), lambda i, s, t: (0, 0)),
        scratch_shapes=[
            pltpu.VMEM((n_pad, o_pad), jnp.float32),  # hs = h @ W_top
            pltpu.VMEM((n_pad, o_pad), jnp.float32),  # hd = h @ W_bot
        ],
    )

    # TODO(synk): at realistic N add vmem_limit_bytes (v6e) or a row-tiled
    # "parallel" grid axis over A_hat (v7x, 2 TCs / 64 MiB VMEM).
    out_p = pl.pallas_call(
        kernel,
        out_shape=jax.ShapeDtypeStruct((m_pad, o_pad), jnp.float32),
        grid_spec=grid_spec,
        compiler_params=pltpu.CompilerParams(
            dimension_semantics=("arbitrary",)),
    )(src_sel, dst_sel, a_p, x_p, w_stack, b_stack, wl_stack, bl_p)

    return out_p[:m, :out_dim][None]                 # unsqueeze(0)


def reference_forward(params, x, g_edge_index, index01):
    n = x.shape[0]
    a_hat = gcn_norm_dense(g_edge_index, n)
    h = x
    for (w, b) in params["convs"]:
        h = jax.nn.relu(a_hat @ h @ w + b)
    src, dst = g_edge_index[0], g_edge_index[1]
    lg = jnp.concatenate([h[src], h[dst]], axis=-1)
    z = lg[index01][None] @ params["linear_w"].T + params["linear_b"]
    return jax.nn.sigmoid(z)


# ------------------------------- main ----------------------------------------

if __name__ == "__main__":
    N = 16                    # num nodes
    INPUT_DIM = 32
    HIDDEN_DIM = INPUT_DIM    # hidden_dim defaults to input_dim
    OUTPUT_DIM = 1
    NUM_CONVS = 2

    key = jax.random.PRNGKey(0)
    k_x, k_w1, k_b1, k_w2, k_b2, k_wl, k_bl = jax.random.split(key, 7)

    # node features
    x = jax.random.normal(k_x, (N, INPUT_DIM), jnp.float32)

    # bidirectional ring graph: 32 directed edges
    idx = jnp.arange(N, dtype=jnp.int32)
    src = jnp.concatenate([idx, (idx + 1) % N])
    dst = jnp.concatenate([(idx + 1) % N, idx])
    g_edge_index = jnp.stack([src, dst])             # [2, 32]
    lg_edge_index = jnp.zeros((2, 4), jnp.int32)     # unused in forward
    index01 = jnp.array([0, 3, 5, 7, 10, 17, 21, 30], jnp.int32)  # selected edges

    # deterministic parameters (synthetic init, no checkpoint load)
    params = {
        "convs": [
            (0.1 * jax.random.normal(k_w1, (INPUT_DIM, HIDDEN_DIM), jnp.float32),
             0.1 * jax.random.normal(k_b1, (HIDDEN_DIM,), jnp.float32)),
            (0.1 * jax.random.normal(k_w2, (HIDDEN_DIM, HIDDEN_DIM), jnp.float32),
             0.1 * jax.random.normal(k_b2, (HIDDEN_DIM,), jnp.float32)),
        ][:NUM_CONVS],
        "linear_w": 0.1 * jax.random.normal(k_wl, (OUTPUT_DIM, 2 * HIDDEN_DIM),
                                            jnp.float32),
        "linear_b": 0.1 * jax.random.normal(k_bl, (OUTPUT_DIM,), jnp.float32),
    }

    fwd = jax.jit(node_conv_gnn_forward)
    out = fwd(params, x, g_edge_index, lg_edge_index, index01)
    out = jax.block_until_ready(out)

    ref = reference_forward(params, x, g_edge_index, index01)
    assert out.shape == (1, index01.shape[0], OUTPUT_DIM), out.shape
    # bf16 MXU operands (f32 accumulation) vs pure-f32 reference: ~1e-3-scale
    # relative error per dot, well within 1e-2 after the sigmoid.
    assert jnp.allclose(out, ref, atol=1e-2, rtol=1e-2), (out, ref)

    print("KERNEL_OK")
</pallas_src>

<mosaic_0001>
module attributes {stable_mosaic.version = 11 : i64} {
  func.func @_fused_gnn_kernel(%arg0: i32, %arg1: memref<8xi32, #tpu.memory_space<smem>>, %arg2: memref<8xi32, #tpu.memory_space<smem>>, %arg3: memref<16x16xbf16, #tpu.memory_space<vmem>>, %arg4: memref<16x128xbf16, #tpu.memory_space<vmem>>, %arg5: memref<2x128x128xbf16, #tpu.memory_space<vmem>>, %arg6: memref<2x1x128xf32, #tpu.memory_space<vmem>>, %arg7: memref<2x128x128xbf16, #tpu.memory_space<vmem>>, %arg8: memref<1x128xf32, #tpu.memory_space<vmem>>, %arg9: memref<8x128xf32, #tpu.memory_space<vmem>>, %arg10: memref<16x128xf32, #tpu.memory_space<vmem>>, %arg11: memref<16x128xf32, #tpu.memory_space<vmem>>) attributes {dimension_semantics = [#tpu.dimension_semantics<arbitrary>], iteration_bounds = array<i64: 1>, scalar_prefetch = 2 : i64, scratch_operands = 2 : i64, tpu.core_type = #tpu.core_type<tc>, window_params = [{pipeline_mode = #tpu.pipeline_mode<synchronous>, transform_indices = @transform_0, window_bounds = array<i64: 16, 16>}, {pipeline_mode = #tpu.pipeline_mode<synchronous>, transform_indices = @transform_1, window_bounds = array<i64: 16, 128>}, {pipeline_mode = #tpu.pipeline_mode<synchronous>, transform_indices = @transform_2, window_bounds = array<i64: 2, 128, 128>}, {pipeline_mode = #tpu.pipeline_mode<synchronous>, transform_indices = @transform_3, window_bounds = array<i64: 2, 1, 128>}, {pipeline_mode = #tpu.pipeline_mode<synchronous>, transform_indices = @transform_4, window_bounds = array<i64: 2, 128, 128>}, {pipeline_mode = #tpu.pipeline_mode<synchronous>, transform_indices = @transform_5, window_bounds = array<i64: 1, 128>}, {pipeline_mode = #tpu.pipeline_mode<synchronous>, transform_indices = @transform_6, window_bounds = array<i64: 8, 128>}]} {
    %c0 = arith.constant 0 : index
    %c0_0 = arith.constant 0 : index
    %0 = vector.load %arg3[%c0, %c0_0] : memref<16x16xbf16, #tpu.memory_space<vmem>>, vector<16x16xbf16>
    %c0_1 = arith.constant 0 : index
    %c0_2 = arith.constant 0 : index
    %1 = vector.load %arg4[%c0_1, %c0_2] : memref<16x128xbf16, #tpu.memory_space<vmem>>, vector<16x128xbf16>
    %c0_3 = arith.constant 0 : index
    %c0_4 = arith.constant 0 : index
    %c0_5 = arith.constant 0 : index
    %2 = vector.load %arg5[%c0_3, %c0_4, %c0_5] : memref<2x128x128xbf16, #tpu.memory_space<vmem>>, vector<1x128x128xbf16>
    %3 = vector.shape_cast %2 : vector<1x128x128xbf16> to vector<128x128xbf16>
    %cst = arith.constant dense<0.000000e+00> : vector<16x128xf32>
    %4 = tpu.matmul %1, %3, %cst {dimension_numbers = #tpu.dot_dimension_numbers<[1], [0], [0], [1], [0, 0, 1, 1], [], []>} : vector<16x128xbf16>, vector<128x128xbf16>, vector<16x128xf32> -> vector<16x128xf32>
    %5 = arith.truncf %4 : vector<16x128xf32> to vector<16x128xbf16>
    %cst_6 = arith.constant dense<0.000000e+00> : vector<16x128xf32>
    %6 = tpu.matmul %0, %5, %cst_6 {dimension_numbers = #tpu.dot_dimension_numbers<[1], [0], [0], [1], [0, 0, 1, 1], [], []>} : vector<16x16xbf16>, vector<16x128xbf16>, vector<16x128xf32> -> vector<16x128xf32>
    %c0_7 = arith.constant 0 : index
    %c0_8 = arith.constant 0 : index
    %c0_9 = arith.constant 0 : index
    %7 = vector.load %arg6[%c0_7, %c0_8, %c0_9] : memref<2x1x128xf32, #tpu.memory_space<vmem>>, vector<1x1x128xf32>
    %8 = vector.shape_cast %7 : vector<1x1x128xf32> to vector<1x128xf32>
    %9 = vector.broadcast %8 : vector<1x128xf32> to vector<16x128xf32>
    %10 = arith.addf %6, %9 : vector<16x128xf32>
    %cst_10 = arith.constant 0.000000e+00 : f32
    %11 = vector.broadcast %cst_10 : f32 to vector<16x128xf32>
    %12 = arith.maximumf %10, %11 : vector<16x128xf32>
    %13 = arith.truncf %12 : vector<16x128xf32> to vector<16x128xbf16>
    %c1 = arith.constant 1 : index
    %c0_11 = arith.constant 0 : index
    %c0_12 = arith.constant 0 : index
    %14 = vector.load %arg5[%c1, %c0_11, %c0_12] : memref<2x128x128xbf16, #tpu.memory_space<vmem>>, vector<1x128x128xbf16>
    %15 = vector.shape_cast %14 : vector<1x128x128xbf16> to vector<128x128xbf16>
    %cst_13 = arith.constant dense<0.000000e+00> : vector<16x128xf32>
    %16 = tpu.matmul %13, %15, %cst_13 {dimension_numbers = #tpu.dot_dimension_numbers<[1], [0], [0], [1], [0, 0, 1, 1], [], []>} : vector<16x128xbf16>, vector<128x128xbf16>, vector<16x128xf32> -> vector<16x128xf32>
    %17 = arith.truncf %16 : vector<16x128xf32> to vector<16x128xbf16>
    %cst_14 = arith.constant dense<0.000000e+00> : vector<16x128xf32>
    %18 = tpu.matmul %0, %17, %cst_14 {dimension_numbers = #tpu.dot_dimension_numbers<[1], [0], [0], [1], [0, 0, 1, 1], [], []>} : vector<16x16xbf16>, vector<16x128xbf16>, vector<16x128xf32> -> vector<16x128xf32>
    %c1_15 = arith.constant 1 : index
    %c0_16 = arith.constant 0 : index
    %c0_17 = arith.constant 0 : index
    %19 = vector.load %arg6[%c1_15, %c0_16, %c0_17] : memref<2x1x128xf32, #tpu.memory_space<vmem>>, vector<1x1x128xf32>
    %20 = vector.shape_cast %19 : vector<1x1x128xf32> to vector<1x128xf32>
    %21 = vector.broadcast %20 : vector<1x128xf32> to vector<16x128xf32>
    %22 = arith.addf %18, %21 : vector<16x128xf32>
    %cst_18 = arith.constant 0.000000e+00 : f32
    %23 = vector.broadcast %cst_18 : f32 to vector<16x128xf32>
    %24 = arith.maximumf %22, %23 : vector<16x128xf32>
    %25 = arith.truncf %24 : vector<16x128xf32> to vector<16x128xbf16>
    %c0_19 = arith.constant 0 : index
    %c0_20 = arith.constant 0 : index
    %c0_21 = arith.constant 0 : index
    %26 = vector.load %arg7[%c0_19, %c0_20, %c0_21] : memref<2x128x128xbf16, #tpu.memory_space<vmem>>, vector<1x128x128xbf16>
    %27 = vector.shape_cast %26 : vector<1x128x128xbf16> to vector<128x128xbf16>
    %cst_22 = arith.constant dense<0.000000e+00> : vector<16x128xf32>
    %28 = tpu.matmul %25, %27, %cst_22 {dimension_numbers = #tpu.dot_dimension_numbers<[1], [0], [0], [1], [0, 0, 1, 1], [], []>} : vector<16x128xbf16>, vector<128x128xbf16>, vector<16x128xf32> -> vector<16x128xf32>
    %c0_23 = arith.constant 0 : index
    %c0_24 = arith.constant 0 : index
    %29 = vector.load %arg10[%c0_23, %c0_24] : memref<16x128xf32, #tpu.memory_space<vmem>>, vector<16x128xf32>
    tpu.vector_store %arg10[%c0_23, %c0_24], %28 {strides = array<i32>} : memref<16x128xf32, #tpu.memory_space<vmem>>, vector<16x128xf32>,
    %c1_25 = arith.constant 1 : index
    %c0_26 = arith.constant 0 : index
    %c0_27 = arith.constant 0 : index
    %30 = vector.load %arg7[%c1_25, %c0_26, %c0_27] : memref<2x128x128xbf16, #tpu.memory_space<vmem>>, vector<1x128x128xbf16>
    %31 = vector.shape_cast %30 : vector<1x128x128xbf16> to vector<128x128xbf16>
    %cst_28 = arith.constant dense<0.000000e+00> : vector<16x128xf32>
    %32 = tpu.matmul %25, %31, %cst_28 {dimension_numbers = #tpu.dot_dimension_numbers<[1], [0], [0], [1], [0, 0, 1, 1], [], []>} : vector<16x128xbf16>, vector<128x128xbf16>, vector<16x128xf32> -> vector<16x128xf32>
    %c0_29 = arith.constant 0 : index
    %c0_30 = arith.constant 0 : index
    %33 = vector.load %arg11[%c0_29, %c0_30] : memref<16x128xf32, #tpu.memory_space<vmem>>, vector<16x128xf32>
    tpu.vector_store %arg11[%c0_29, %c0_30], %32 {strides = array<i32>} : memref<16x128xf32, #tpu.memory_space<vmem>>, vector<16x128xf32>,
    %cst_31 = arith.constant 0.000000e+00 : f32
    %34 = vector.broadcast %cst_31 : f32 to vector<8x128xf32>
    %c0_32 = arith.constant 0 : index
    %c0_33 = arith.constant 0 : index
    %35 = vector.load %arg9[%c0_32, %c0_33] : memref<8x128xf32, #tpu.memory_space<vmem>>, vector<8x128xf32>
    tpu.vector_store %arg9[%c0_32, %c0_33], %34 {strides = array<i32>} : memref<8x128xf32, #tpu.memory_space<vmem>>, vector<8x128xf32>,
    %c0_34 = arith.constant 0 : index
    %36 = memref.load %arg1[%c0_34] : memref<8xi32, #tpu.memory_space<smem>>
    %37 = arith.index_cast %36 : i32 to index
    %c0_35 = arith.constant 0 : index
    %38 = vector.load %arg10[%37, %c0_35] : memref<16x128xf32, #tpu.memory_space<vmem>>, vector<1x128xf32>
    %c0_36 = arith.constant 0 : index
    %39 = memref.load %arg2[%c0_36] : memref<8xi32, #tpu.memory_space<smem>>
    %40 = arith.index_cast %39 : i32 to index
    %c0_37 = arith.constant 0 : index
    %41 = vector.load %arg11[%40, %c0_37] : memref<16x128xf32, #tpu.memory_space<vmem>>, vector<1x128xf32>
    %42 = arith.addf %38, %41 : vector<1x128xf32>
    %c0_38 = arith.constant 0 : index
    %c0_39 = arith.constant 0 : index
    %43 = vector.load %arg9[%c0_38, %c0_39] : memref<8x128xf32, #tpu.memory_space<vmem>>, vector<1x128xf32>
    tpu.vector_store %arg9[%c0_38, %c0_39], %42 {strides = array<i32>} : memref<8x128xf32, #tpu.memory_space<vmem>>, vector<1x128xf32>,
    %c1_40 = arith.constant 1 : index
    %44 = memref.load %arg1[%c1_40] : memref<8xi32, #tpu.memory_space<smem>>
    %45 = arith.index_cast %44 : i32 to index
    %c0_41 = arith.constant 0 : index
    %46 = vector.load %arg10[%45, %c0_41] : memref<16x128xf32, #tpu.memory_space<vmem>>, vector<1x128xf32>
    %c1_42 = arith.constant 1 : index
    %47 = memref.load %arg2[%c1_42] : memref<8xi32, #tpu.memory_space<smem>>
    %48 = arith.index_cast %47 : i32 to index
    %c0_43 = arith.constant 0 : index
    %49 = vector.load %arg11[%48, %c0_43] : memref<16x128xf32, #tpu.memory_space<vmem>>, vector<1x128xf32>
    %50 = arith.addf %46, %49 : vector<1x128xf32>
    %c1_44 = arith.constant 1 : index
    %c0_45 = arith.constant 0 : index
    %51 = vector.load %arg9[%c1_44, %c0_45] : memref<8x128xf32, #tpu.memory_space<vmem>>, vector<1x128xf32>
    tpu.vector_store %arg9[%c1_44, %c0_45], %50 {strides = array<i32>} : memref<8x128xf32, #tpu.memory_space<vmem>>, vector<1x128xf32>,
    %c2 = arith.constant 2 : index
    %52 = memref.load %arg1[%c2] : memref<8xi32, #tpu.memory_space<smem>>
    %53 = arith.index_cast %52 : i32 to index
    %c0_46 = arith.constant 0 : index
    %54 = vector.load %arg10[%53, %c0_46] : memref<16x128xf32, #tpu.memory_space<vmem>>, vector<1x128xf32>
    %c2_47 = arith.constant 2 : index
    %55 = memref.load %arg2[%c2_47] : memref<8xi32, #tpu.memory_space<smem>>
    %56 = arith.index_cast %55 : i32 to index
    %c0_48 = arith.constant 0 : index
    %57 = vector.load %arg11[%56, %c0_48] : memref<16x128xf32, #tpu.memory_space<vmem>>, vector<1x128xf32>
    %58 = arith.addf %54, %57 : vector<1x128xf32>
    %c2_49 = arith.constant 2 : index
    %c0_50 = arith.constant 0 : index
    %59 = vector.load %arg9[%c2_49, %c0_50] : memref<8x128xf32, #tpu.memory_space<vmem>>, vector<1x128xf32>
    tpu.vector_store %arg9[%c2_49, %c0_50], %58 {strides = array<i32>} : memref<8x128xf32, #tpu.memory_space<vmem>>, vector<1x128xf32>,
    %c3 = arith.constant 3 : index
    %60 = memref.load %arg1[%c3] : memref<8xi32, #tpu.memory_space<smem>>
    %61 = arith.index_cast %60 : i32 to index
    %c0_51 = arith.constant 0 : index
    %62 = vector.load %arg10[%61, %c0_51] : memref<16x128xf32, #tpu.memory_space<vmem>>, vector<1x128xf32>
    %c3_52 = arith.constant 3 : index
    %63 = memref.load %arg2[%c3_52] : memref<8xi32, #tpu.memory_space<smem>>
    %64 = arith.index_cast %63 : i32 to index
    %c0_53 = arith.constant 0 : index
    %65 = vector.load %arg11[%64, %c0_53] : memref<16x128xf32, #tpu.memory_space<vmem>>, vector<1x128xf32>
    %66 = arith.addf %62, %65 : vector<1x128xf32>
    %c3_54 = arith.constant 3 : index
    %c0_55 = arith.constant 0 : index
    %67 = vector.load %arg9[%c3_54, %c0_55] : memref<8x128xf32, #tpu.memory_space<vmem>>, vector<1x128xf32>
    tpu.vector_store %arg9[%c3_54, %c0_55], %66 {strides = array<i32>} : memref<8x128xf32, #tpu.memory_space<vmem>>, vector<1x128xf32>,
    %c4 = arith.constant 4 : index
    %68 = memref.load %arg1[%c4] : memref<8xi32, #tpu.memory_space<smem>>
    %69 = arith.index_cast %68 : i32 to index
    %c0_56 = arith.constant 0 : index
    %70 = vector.load %arg10[%69, %c0_56] : memref<16x128xf32, #tpu.memory_space<vmem>>, vector<1x128xf32>
    %c4_57 = arith.constant 4 : index
    %71 = memref.load %arg2[%c4_57] : memref<8xi32, #tpu.memory_space<smem>>
    %72 = arith.index_cast %71 : i32 to index
    %c0_58 = arith.constant 0 : index
    %73 = vector.load %arg11[%72, %c0_58] : memref<16x128xf32, #tpu.memory_space<vmem>>, vector<1x128xf32>
    %74 = arith.addf %70, %73 : vector<1x128xf32>
    %c4_59 = arith.constant 4 : index
    %c0_60 = arith.constant 0 : index
    %75 = vector.load %arg9[%c4_59, %c0_60] : memref<8x128xf32, #tpu.memory_space<vmem>>, vector<1x128xf32>
    tpu.vector_store %arg9[%c4_59, %c0_60], %74 {strides = array<i32>} : memref<8x128xf32, #tpu.memory_space<vmem>>, vector<1x128xf32>,
    %c5 = arith.constant 5 : index
    %76 = memref.load %arg1[%c5] : memref<8xi32, #tpu.memory_space<smem>>
    %77 = arith.index_cast %76 : i32 to index
    %c0_61 = arith.constant 0 : index
    %78 = vector.load %arg10[%77, %c0_61] : memref<16x128xf32, #tpu.memory_space<vmem>>, vector<1x128xf32>
    %c5_62 = arith.constant 5 : index
    %79 = memref.load %arg2[%c5_62] : memref<8xi32, #tpu.memory_space<smem>>
    %80 = arith.index_cast %79 : i32 to index
    %c0_63 = arith.constant 0 : index
    %81 = vector.load %arg11[%80, %c0_63] : memref<16x128xf32, #tpu.memory_space<vmem>>, vector<1x128xf32>
    %82 = arith.addf %78, %81 : vector<1x128xf32>
    %c5_64 = arith.constant 5 : index
    %c0_65 = arith.constant 0 : index
    %83 = vector.load %arg9[%c5_64, %c0_65] : memref<8x128xf32, #tpu.memory_space<vmem>>, vector<1x128xf32>
    tpu.vector_store %arg9[%c5_64, %c0_65], %82 {strides = array<i32>} : memref<8x128xf32, #tpu.memory_space<vmem>>, vector<1x128xf32>,
    %c6 = arith.constant 6 : index
    %84 = memref.load %arg1[%c6] : memref<8xi32, #tpu.memory_space<smem>>
    %85 = arith.index_cast %84 : i32 to index
    %c0_66 = arith.constant 0 : index
    %86 = vector.load %arg10[%85, %c0_66] : memref<16x128xf32, #tpu.memory_space<vmem>>, vector<1x128xf32>
    %c6_67 = arith.constant 6 : index
    %87 = memref.load %arg2[%c6_67] : memref<8xi32, #tpu.memory_space<smem>>
    %88 = arith.index_cast %87 : i32 to index
    %c0_68 = arith.constant 0 : index
    %89 = vector.load %arg11[%88, %c0_68] : memref<16x128xf32, #tpu.memory_space<vmem>>, vector<1x128xf32>
    %90 = arith.addf %86, %89 : vector<1x128xf32>
    %c6_69 = arith.constant 6 : index
    %c0_70 = arith.constant 0 : index
    %91 = vector.load %arg9[%c6_69, %c0_70] : memref<8x128xf32, #tpu.memory_space<vmem>>, vector<1x128xf32>
    tpu.vector_store %arg9[%c6_69, %c0_70], %90 {strides = array<i32>} : memref<8x128xf32, #tpu.memory_space<vmem>>, vector<1x128xf32>,
    %c7 = arith.constant 7 : index
    %92 = memref.load %arg1[%c7] : memref<8xi32, #tpu.memory_space<smem>>
    %93 = arith.index_cast %92 : i32 to index
    %c0_71 = arith.constant 0 : index
    %94 = vector.load %arg10[%93, %c0_71] : memref<16x128xf32, #tpu.memory_space<vmem>>, vector<1x128xf32>
    %c7_72 = arith.constant 7 : index
    %95 = memref.load %arg2[%c7_72] : memref<8xi32, #tpu.memory_space<smem>>
    %96 = arith.index_cast %95 : i32 to index
    %c0_73 = arith.constant 0 : index
    %97 = vector.load %arg11[%96, %c0_73] : memref<16x128xf32, #tpu.memory_space<vmem>>, vector<1x128xf32>
    %98 = arith.addf %94, %97 : vector<1x128xf32>
    %c7_74 = arith.constant 7 : index
    %c0_75 = arith.constant 0 : index
    %99 = vector.load %arg9[%c7_74, %c0_75] : memref<8x128xf32, #tpu.memory_space<vmem>>, vector<1x128xf32>
    tpu.vector_store %arg9[%c7_74, %c0_75], %98 {strides = array<i32>} : memref<8x128xf32, #tpu.memory_space<vmem>>, vector<1x128xf32>,
    %c0_76 = arith.constant 0 : index
    %c0_77 = arith.constant 0 : index
    %100 = vector.load %arg9[%c0_76, %c0_77] : memref<8x128xf32, #tpu.memory_space<vmem>>, vector<8x128xf32>
    %c0_78 = arith.constant 0 : index
    %c0_79 = arith.constant 0 : index
    %101 = vector.load %arg8[%c0_78, %c0_79] : memref<1x128xf32, #tpu.memory_space<vmem>>, vector<1x128xf32>
    %102 = vector.broadcast %101 : vector<1x128xf32> to vector<8x128xf32>
    %103 = arith.addf %100, %102 : vector<8x128xf32>
    %cst_80 = arith.constant 5.000000e-01 : f32
    %104 = vector.broadcast %cst_80 : f32 to vector<8x128xf32>
    %105 = arith.mulf %104, %103 : vector<8x128xf32>
    %106 = math.tanh %105 : vector<8x128xf32>
    %cst_81 = arith.constant 1.000000e+00 : f32
    %107 = vector.broadcast %cst_81 : f32 to vector<8x128xf32>
    %108 = arith.addf %106, %107 : vector<8x128xf32>
    %cst_82 = arith.constant 5.000000e-01 : f32
    %109 = vector.broadcast %cst_82 : f32 to vector<8x128xf32>
    %110 = arith.mulf %109, %108 : vector<8x128xf32>
    %c0_83 = arith.constant 0 : index
    %c0_84 = arith.constant 0 : index
    %111 = vector.load %arg9[%c0_83, %c0_84] : memref<8x128xf32, #tpu.memory_space<vmem>>, vector<8x128xf32>
    tpu.vector_store %arg9[%c0_83, %c0_84], %110 {strides = array<i32>} : memref<8x128xf32, #tpu.memory_space<vmem>>, vector<8x128xf32>,
    return
  }
  func.func @transform_0(%arg0: i32, %arg1: memref<8xi32, #tpu.memory_space<smem>>, %arg2: memref<8xi32, #tpu.memory_space<smem>>) -> (i32, i32) {
    %c0_i32 = arith.constant 0 : i32
    %c0_i32_0 = arith.constant 0 : i32
    %c0_i32_1 = arith.constant 0 : i32
    return %c0_i32, %c0_i32_0 : i32, i32
  }
  func.func @transform_1(%arg0: i32, %arg1: memref<8xi32, #tpu.memory_space<smem>>, %arg2: memref<8xi32, #tpu.memory_space<smem>>) -> (i32, i32) {
    %c0_i32 = arith.constant 0 : i32
    %c0_i32_0 = arith.constant 0 : i32
    %c0_i32_1 = arith.constant 0 : i32
    return %c0_i32, %c0_i32_0 : i32, i32
  }
  func.func @transform_2(%arg0: i32, %arg1: memref<8xi32, #tpu.memory_space<smem>>, %arg2: memref<8xi32, #tpu.memory_space<smem>>) -> (i32, i32, i32) {
    %c0_i32 = arith.constant 0 : i32
    %c0_i32_0 = arith.constant 0 : i32
    %c0_i32_1 = arith.constant 0 : i32
    %c0_i32_2 = arith.constant 0 : i32
    return %c0_i32, %c0_i32_0, %c0_i32_1 : i32, i32, i32
  }
  func.func @transform_3(%arg0: i32, %arg1: memref<8xi32, #tpu.memory_space<smem>>, %arg2: memref<8xi32, #tpu.memory_space<smem>>) -> (i32, i32, i32) {
    %c0_i32 = arith.constant 0 : i32
    %c0_i32_0 = arith.constant 0 : i32
    %c0_i32_1 = arith.constant 0 : i32
    %c0_i32_2 = arith.constant 0 : i32
    return %c0_i32, %c0_i32_0, %c0_i32_1 : i32, i32, i32
  }
  func.func @transform_4(%arg0: i32, %arg1: memref<8xi32, #tpu.memory_space<smem>>, %arg2: memref<8xi32, #tpu.memory_space<smem>>) -> (i32, i32, i32) {
    %c0_i32 = arith.constant 0 : i32
    %c0_i32_0 = arith.constant 0 : i32
    %c0_i32_1 = arith.constant 0 : i32
    %c0_i32_2 = arith.constant 0 : i32
    return %c0_i32, %c0_i32_0, %c0_i32_1 : i32, i32, i32
  }
  func.func @transform_5(%arg0: i32, %arg1: memref<8xi32, #tpu.memory_space<smem>>, %arg2: memref<8xi32, #tpu.memory_space<smem>>) -> (i32, i32) {
    %c0_i32 = arith.constant 0 : i32
    %c0_i32_0 = arith.constant 0 : i32
    %c0_i32_1 = arith.constant 0 : i32
    return %c0_i32, %c0_i32_0 : i32, i32
  }
  func.func @transform_6(%arg0: i32, %arg1: memref<8xi32, #tpu.memory_space<smem>>, %arg2: memref<8xi32, #tpu.memory_space<smem>>) -> (i32, i32) {
    %c0_i32 = arith.constant 0 : i32
    %c0_i32_0 = arith.constant 0 : i32
    %c0_i32_1 = arith.constant 0 : i32
    return %c0_i32, %c0_i32_0 : i32, i32
  }
}

</mosaic_0001>

<llo_original>
// kernel: node_conv_gnn_forward.1
$region0: #{node_conv_gnn_forward.1}
  #allocation0 [shape = 'u32[]', space=smem, size = 0x4, offset = 0x4, fixed_abs, tag = 'smem constant byte address 0x4 - core index']
  #allocation1 [shape = 'u32[72,128]{1,0:T(1,128)}', space=vmem, size = 0x9000, scoped, tag = 'internal scratch']
  #allocation2 [shape = 'f32[16,128]{1,0:T(8,128)}', space=vmem, size = 0x2000, scoped, tag = 'scratch operand']
  #allocation3 [shape = 'f32[16,128]{1,0:T(8,128)}', space=vmem, size = 0x2000, scoped, tag = 'scratch operand']
  #allocation4 [shape = 's32[1]{0}', space=sflag, size = 0x4, scoped, tag = 'scoped memory for node_conv_gnn_forward.1']
  #allocation5 [shape = 'u8[512]{0}', space=smem, size = 0x200, scoped, tag = 'prefetched SMEM operand 0']
  #allocation6 [shape = 'u8[512]{0}', space=smem, size = 0x200, scoped, tag = 'prefetched SMEM operand 1']
  %s0 = inlined_call_operand.vmem [shape: s32[8], index: 0, kind: input, shape index: {}]
  %s1 = inlined_call_operand.vmem [shape: s32[8], index: 1, kind: input, shape index: {}]
  %s2 = inlined_call_operand.vmem [shape: bf16[16,16], index: 2, kind: input, shape index: {}]
  %s3 = inlined_call_operand.vmem [shape: bf16[16,128], index: 3, kind: input, shape index: {}]
  %s4 = inlined_call_operand.vmem [shape: bf16[2,128,128], index: 4, kind: input, shape index: {}]
  %s5 = inlined_call_operand.vmem [shape: f32[2,1,128], index: 5, kind: input, shape index: {}]
  %s6 = inlined_call_operand.vmem [shape: bf16[2,128,128], index: 6, kind: input, shape index: {}]
  %s7 = inlined_call_operand.vmem [shape: f32[1,128], index: 7, kind: input, shape index: {}]
  %s8 = inlined_call_operand.vmem [shape: f32[8,128], index: 8, kind: output, shape index: {}]
  %s9 = sld [smem:[#allocation0]]
  $region34: #{node_conv_gnn_forward.1} parent=0
    _
  %s11 = ssub.s32 1, %s9
  %s12 = scalar_select 0, %s11, %s9
  %s14 = sshll.u32 %s0, 4
  %s15 = int_to_ptr.vmem [resolvable:$true] %s14
  %17 = dma.vmem_to_smem %s15, 16, [#allocation5], [#allocation4]
  %s19 = sshll.u32 %s1, 4
  %s20 = int_to_ptr.vmem [resolvable:$true] %s19
  %22 = dma.vmem_to_smem %s20, 16, [#allocation6], [#allocation4]
  %24 = dma.done [#allocation4], 32
  %25 = sfence
  // Predicated region
  $region2: #{node_conv_gnn_forward.1} parent=0 // pred_check
    _
  $region3: #{node_conv_gnn_forward.1} parent=0 // pred_check_branch
    %27 = sbr.rel (0) target = $region5
  $region4: #{node_conv_gnn_forward.1} parent=0 // pred_region
    _
  $region5: #{node_conv_gnn_forward.1} parent=0 // pred_fallthru
    _
  // Predicated region
  $region6: #{node_conv_gnn_forward.1} parent=0 // pred_check
    _
  $region7: #{node_conv_gnn_forward.1} parent=0 // pred_check_branch
    %29 = sbr.rel (0) target = $region9
  $region8: #{node_conv_gnn_forward.1} parent=0 // pred_region
    _
  $region9: #{node_conv_gnn_forward.1} parent=0 // pred_fallthru
    _
  // Predicated region
  $region10: #{node_conv_gnn_forward.1} parent=0 // pred_check
    _
  $region11: #{node_conv_gnn_forward.1} parent=0 // pred_check_branch
    %31 = sbr.rel (0) target = $region13
  $region12: #{node_conv_gnn_forward.1} parent=0 // pred_region
    _
  $region13: #{node_conv_gnn_forward.1} parent=0 // pred_fallthru
    _
  // Predicated region
  $region14: #{node_conv_gnn_forward.1} parent=0 // pred_check
    _
  $region15: #{node_conv_gnn_forward.1} parent=0 // pred_check_branch
    %33 = sbr.rel (0) target = $region17
  $region16: #{node_conv_gnn_forward.1} parent=0 // pred_region
    _
  $region17: #{node_conv_gnn_forward.1} parent=0 // pred_fallthru
    _
  // Predicated region
  $region18: #{node_conv_gnn_forward.1} parent=0 // pred_check
    _
  $region19: #{node_conv_gnn_forward.1} parent=0 // pred_check_branch
    %35 = sbr.rel (0) target = $region21
  $region20: #{node_conv_gnn_forward.1} parent=0 // pred_region
    _
  $region21: #{node_conv_gnn_forward.1} parent=0 // pred_fallthru
    _
  // Predicated region
  $region22: #{node_conv_gnn_forward.1} parent=0 // pred_check
    _
  $region23: #{node_conv_gnn_forward.1} parent=0 // pred_check_branch
    %37 = sbr.rel (0) target = $region25
  $region24: #{node_conv_gnn_forward.1} parent=0 // pred_region
    _
  $region25: #{node_conv_gnn_forward.1} parent=0 // pred_fallthru
    _
  %v39 = vld [vmem:[%s2] sm:$0xf]
  %v40 = vld [vmem:[%s2 + $0x4] sm:$0xf]
  %v41 = vld [vmem:[%s3] sm:$0xf]
  %v42 = vld [vmem:[%s3 + $0x4] sm:$0xf]
  %v43 = vld [vmem:[%s4] sm:$0xf]
  %v44 = vld [vmem:[%s4 + $0x4] sm:$0xf]
  %v45 = vld [vmem:[%s4 + $0x8] sm:$0xf]
  %v46 = vld [vmem:[%s4 + $0xc] sm:$0xf]
  %v47 = vld [vmem:[%s4 + $0x10] sm:$0xf]
  %v48 = vld [vmem:[%s4 + $0x14] sm:$0xf]
  %v49 = vld [vmem:[%s4 + $0x18] sm:$0xf]
  %v50 = vld [vmem:[%s4 + $0x1c] sm:$0xf]
  %v51 = vld [vmem:[%s4 + $0x20] sm:$0xf]
  %v52 = vld [vmem:[%s4 + $0x24] sm:$0xf]
  %v53 = vld [vmem:[%s4 + $0x28] sm:$0xf]
  %v54 = vld [vmem:[%s4 + $0x2c] sm:$0xf]
  %v55 = vld [vmem:[%s4 + $0x30] sm:$0xf]
  %v56 = vld [vmem:[%s4 + $0x34] sm:$0xf]
  %v57 = vld [vmem:[%s4 + $0x38] sm:$0xf]
  %v58 = vld [vmem:[%s4 + $0x3c] sm:$0xf]
  %v61 = vunpack.c.l.b16 %v41
  %v62 = vunpack.c.l.b16 %v42
  %v63 = vpack.c.b16 %v62, %v61
  %v81 = vunpack.c.l.b16 %v43
  %v82 = vunpack.c.l.b16 %v44
  %v83 = vunpack.c.l.b16 %v45
  %v84 = vunpack.c.l.b16 %v46
  %v85 = vunpack.c.l.b16 %v47
  %v86 = vunpack.c.l.b16 %v48
  %v87 = vunpack.c.l.b16 %v49
  %v88 = vunpack.c.l.b16 %v50
  %v89 = vunpack.c.l.b16 %v51
  %v90 = vunpack.c.l.b16 %v52
  %v91 = vunpack.c.l.b16 %v53
  %v92 = vunpack.c.l.b16 %v54
  %v93 = vunpack.c.l.b16 %v55
  %v94 = vunpack.c.l.b16 %v56
  %v95 = vunpack.c.l.b16 %v57
  %v96 = vunpack.c.l.b16 %v58
  %v97 = vpack.c.b16 %v82, %v81
  %v98 = vpack.c.b16 %v84, %v83
  %v99 = vpack.c.b16 %v86, %v85
  %v100 = vpack.c.b16 %v88, %v87
  %v101 = vpack.c.b16 %v90, %v89
  %v102 = vpack.c.b16 %v92, %v91
  %v103 = vpack.c.b16 %v94, %v93
  %v104 = vpack.c.b16 %v96, %v95
  %113 = vmatpush.bf16.msra.mxu0 %v104
  %114 = vmatpush.bf16.msra.mxu0 %v103
  %115 = vmatpush.bf16.msra.mxu0 %v102
  %116 = vmatpush.bf16.msra.mxu0 %v101
  %117 = vmatpush.bf16.msra.mxu0 %v100
  %118 = vmatpush.bf16.msra.mxu0 %v99
  %119 = vmatpush.bf16.msra.mxu0 %v98
  %120 = vmatpush.bf16.msra.mxu0 %v97
  %121 = vmatmul.bf16.gmra.mxu0 %v63
  %v122 = vpop.f32.mrf.mxu0
  %v123 = vadd.f32 0.0, %v122
  %v124 = vpop.f32.mrf.mxu0
  %v125 = vadd.f32 0.0, %v124
  %126 = vdwg.mxu0
  %v127 = vpack.c.bf16 %v125, %v123
  %v128 = vld [vmem:[%s5] sm:$0x1]
  %v130 = vperm.slane %v128, 0
  %v134 = vunpack.c.l.b16 %v39
  %v135 = vunpack.c.l.b16 %v40
  %v136 = vpack.c.b16 %v135, %v134
  %vm137 = vcmask 130048
  %v139 = vsel %vm137, %v136, 0
  %141 = vmatpush.bf16.msra.mxu0 0
  %142 = vmatpush.bf16.msra.mxu0 0
  %143 = vmatpush.bf16.msra.mxu0 0
  %144 = vmatpush.bf16.msra.mxu0 0
  %145 = vmatpush.bf16.msra.mxu0 0
  %146 = vmatpush.bf16.msra.mxu0 0
  %147 = vmatpush.bf16.msra.mxu0 0
  %148 = vmatpush.bf16.msra.mxu0 %v127
  %149 = vmatmul.bf16.gmra.mxu0 %v139
  %v150 = vpop.f32.mrf.mxu0
  %v151 = vadd.f32 %v130, %v150
  %v152 = vpop.f32.mrf.mxu0
  %v153 = vadd.f32 %v130, %v152
  %154 = vdwg.mxu0
  %v155 = vmax.f32 %v151, 0.0
  %v156 = vmax.f32 %v153, 0.0
  %v157 = vpack.c.bf16 %v156, %v155
  %s158 = scalar_lea.vmem %s4, 64
  %v159 = vld [vmem:[%s158] sm:$0xf]
  %v160 = vld [vmem:[%s158 + $0x4] sm:$0xf]
  %v161 = vld [vmem:[%s158 + $0x8] sm:$0xf]
  %v162 = vld [vmem:[%s158 + $0xc] sm:$0xf]
  %v163 = vld [vmem:[%s158 + $0x10] sm:$0xf]
  %v164 = vld [vmem:[%s158 + $0x14] sm:$0xf]
  %v165 = vld [vmem:[%s158 + $0x18] sm:$0xf]
  %v166 = vld [vmem:[%s158 + $0x1c] sm:$0xf]
  %v167 = vld [vmem:[%s158 + $0x20] sm:$0xf]
  %v168 = vld [vmem:[%s158 + $0x24] sm:$0xf]
  %v169 = vld [vmem:[%s158 + $0x28] sm:$0xf]
  %v170 = vld [vmem:[%s158 + $0x2c] sm:$0xf]
  %v171 = vld [vmem:[%s158 + $0x30] sm:$0xf]
  %v172 = vld [vmem:[%s158 + $0x34] sm:$0xf]
  %v173 = vld [vmem:[%s158 + $0x38] sm:$0xf]
  %v174 = vld [vmem:[%s158 + $0x3c] sm:$0xf]
  %v191 = vunpack.c.l.b16 %v159
  %v192 = vunpack.c.l.b16 %v160
  %v193 = vunpack.c.l.b16 %v161
  %v194 = vunpack.c.l.b16 %v162
  %v195 = vunpack.c.l.b16 %v163
  %v196 = vunpack.c.l.b16 %v164
  %v197 = vunpack.c.l.b16 %v165
  %v198 = vunpack.c.l.b16 %v166
  %v199 = vunpack.c.l.b16 %v167
  %v200 = vunpack.c.l.b16 %v168
  %v201 = vunpack.c.l.b16 %v169
  %v202 = vunpack.c.l.b16 %v170
  %v203 = vunpack.c.l.b16 %v171
  %v204 = vunpack.c.l.b16 %v172
  %v205 = vunpack.c.l.b16 %v173
  %v206 = vunpack.c.l.b16 %v174
  %v207 = vpack.c.b16 %v192, %v191
  %v208 = vpack.c.b16 %v194, %v193
  %v209 = vpack.c.b16 %v196, %v195
  %v210 = vpack.c.b16 %v198, %v197
  %v211 = vpack.c.b16 %v200, %v199
  %v212 = vpack.c.b16 %v202, %v201
  %v213 = vpack.c.b16 %v204, %v203
  %v214 = vpack.c.b16 %v206, %v205
  %223 = vmatpush.bf16.msra.mxu0 %v214
  %224 = vmatpush.bf16.msra.mxu0 %v213
  %225 = vmatpush.bf16.msra.mxu0 %v212
  %226 = vmatpush.bf16.msra.mxu0 %v211
  %227 = vmatpush.bf16.msra.mxu0 %v210
  %228 = vmatpush.bf16.msra.mxu0 %v209
  %229 = vmatpush.bf16.msra.mxu0 %v208
  %230 = vmatpush.bf16.msra.mxu0 %v207
  %231 = vmatmul.bf16.gmra.mxu0 %v157
  %v232 = vpop.f32.mrf.mxu0
  %v233 = vadd.f32 0.0, %v232
  %v234 = vpop.f32.mrf.mxu0
  %v235 = vadd.f32 0.0, %v234
  %236 = vdwg.mxu0
  %v237 = vpack.c.bf16 %v235, %v233
  %s238 = scalar_lea.vmem %s5, 1
  %v239 = vld [vmem:[%s238] sm:$0x1]
  %v241 = vperm.slane %v239, 0
  %243 = vmatpush.bf16.msra.mxu0 0
  %244 = vmatpush.bf16.msra.mxu0 0
  %245 = vmatpush.bf16.msra.mxu0 0
  %246 = vmatpush.bf16.msra.mxu0 0
  %247 = vmatpush.bf16.msra.mxu0 0
  %248 = vmatpush.bf16.msra.mxu0 0
  %249 = vmatpush.bf16.msra.mxu0 0
  %250 = vmatpush.bf16.msra.mxu0 %v237
  %251 = vmatmul.bf16.gmra.mxu0 %v139
  %v252 = vpop.f32.mrf.mxu0
  %v253 = vadd.f32 %v241, %v252
  %v254 = vpop.f32.mrf.mxu0
  %v255 = vadd.f32 %v241, %v254
  %256 = vdwg.mxu0
  %v257 = vmax.f32 %v253, 0.0
  %v258 = vmax.f32 %v255, 0.0
  %v259 = vpack.c.bf16 %v258, %v257
  %v260 = vld [vmem:[%s6] sm:$0xf]
  %v261 = vld [vmem:[%s6 + $0x4] sm:$0xf]
  %v262 = vld [vmem:[%s6 + $0x8] sm:$0xf]
  %v263 = vld [vmem:[%s6 + $0xc] sm:$0xf]
  %v264 = vld [vmem:[%s6 + $0x10] sm:$0xf]
  %v265 = vld [vmem:[%s6 + $0x14] sm:$0xf]
  %v266 = vld [vmem:[%s6 + $0x18] sm:$0xf]
  %v267 = vld [vmem:[%s6 + $0x1c] sm:$0xf]
  %v268 = vld [vmem:[%s6 + $0x20] sm:$0xf]
  %v269 = vld [vmem:[%s6 + $0x24] sm:$0xf]
  %v270 = vld [vmem:[%s6 + $0x28] sm:$0xf]
  %v271 = vld [vmem:[%s6 + $0x2c] sm:$0xf]
  %v272 = vld [vmem:[%s6 + $0x30] sm:$0xf]
  %v273 = vld [vmem:[%s6 + $0x34] sm:$0xf]
  %v274 = vld [vmem:[%s6 + $0x38] sm:$0xf]
  %v275 = vld [vmem:[%s6 + $0x3c] sm:$0xf]
  %v292 = vunpack.c.l.b16 %v260
  %v293 = vunpack.c.l.b16 %v261
  %v294 = vunpack.c.l.b16 %v262
  %v295 = vunpack.c.l.b16 %v263
  %v296 = vunpack.c.l.b16 %v264
  %v297 = vunpack.c.l.b16 %v265
  %v298 = vunpack.c.l.b16 %v266
  %v299 = vunpack.c.l.b16 %v267
  %v300 = vunpack.c.l.b16 %v268
  %v301 = vunpack.c.l.b16 %v269
  %v302 = vunpack.c.l.b16 %v270
  %v303 = vunpack.c.l.b16 %v271
  %v304 = vunpack.c.l.b16 %v272
  %v305 = vunpack.c.l.b16 %v273
  %v306 = vunpack.c.l.b16 %v274
  %v307 = vunpack.c.l.b16 %v275
  %v308 = vpack.c.b16 %v293, %v292
  %v309 = vpack.c.b16 %v295, %v294
  %v310 = vpack.c.b16 %v297, %v296
  %v311 = vpack.c.b16 %v299, %v298
  %v312 = vpack.c.b16 %v301, %v300
  %v313 = vpack.c.b16 %v303, %v302
  %v314 = vpack.c.b16 %v305, %v304
  %v315 = vpack.c.b16 %v307, %v306
  %324 = vmatpush.bf16.msra.mxu0 %v315
  %325 = vmatpush.bf16.msra.mxu0 %v314
  %326 = vmatpush.bf16.msra.mxu0 %v313
  %327 = vmatpush.bf16.msra.mxu0 %v312
  %328 = vmatpush.bf16.msra.mxu0 %v311
  %329 = vmatpush.bf16.msra.mxu0 %v310
  %330 = vmatpush.bf16.msra.mxu0 %v309
  %331 = vmatpush.bf16.msra.mxu0 %v308
  %332 = vmatmul.bf16.gmra.mxu0 %v259
  %v333 = vpop.f32.mrf.mxu0
  %v334 = vadd.f32 0.0, %v333
  %v335 = vpop.f32.mrf.mxu0
  %v336 = vadd.f32 0.0, %v335
  %337 = vdwg.mxu0
  %338 = vst [vmem:[#allocation2] sm:$0xff] %v334
  %339 = vst [vmem:[#allocation2 + $0x8] sm:$0xff] %v336
  %s340 = scalar_lea.vmem %s6, 64
  %v341 = vld [vmem:[%s340] sm:$0xf]
  %v342 = vld [vmem:[%s340 + $0x4] sm:$0xf]
  %v343 = vld [vmem:[%s340 + $0x8] sm:$0xf]
  %v344 = vld [vmem:[%s340 + $0xc] sm:$0xf]
  %v345 = vld [vmem:[%s340 + $0x10] sm:$0xf]
  %v346 = vld [vmem:[%s340 + $0x14] sm:$0xf]
  %v347 = vld [vmem:[%s340 + $0x18] sm:$0xf]
  %v348 = vld [vmem:[%s340 + $0x1c] sm:$0xf]
  %v349 = vld [vmem:[%s340 + $0x20] sm:$0xf]
  %v350 = vld [vmem:[%s340 + $0x24] sm:$0xf]
  %v351 = vld [vmem:[%s340 + $0x28] sm:$0xf]
  %v352 = vld [vmem:[%s340 + $0x2c] sm:$0xf]
  %v353 = vld [vmem:[%s340 + $0x30] sm:$0xf]
  %v354 = vld [vmem:[%s340 + $0x34] sm:$0xf]
  %v355 = vld [vmem:[%s340 + $0x38] sm:$0xf]
  %v356 = vld [vmem:[%s340 + $0x3c] sm:$0xf]
  %v373 = vunpack.c.l.b16 %v341
  %v374 = vunpack.c.l.b16 %v342
  %v375 = vunpack.c.l.b16 %v343
  %v376 = vunpack.c.l.b16 %v344
  %v377 = vunpack.c.l.b16 %v345
  %v378 = vunpack.c.l.b16 %v346
  %v379 = vunpack.c.l.b16 %v347
  %v380 = vunpack.c.l.b16 %v348
  %v381 = vunpack.c.l.b16 %v349
  %v382 = vunpack.c.l.b16 %v350
  %v383 = vunpack.c.l.b16 %v351
  %v384 = vunpack.c.l.b16 %v352
  %v385 = vunpack.c.l.b16 %v353
  %v386 = vunpack.c.l.b16 %v354
  %v387 = vunpack.c.l.b16 %v355
  %v388 = vunpack.c.l.b16 %v356
  %v389 = vpack.c.b16 %v374, %v373
  %v390 = vpack.c.b16 %v376, %v375
  %v391 = vpack.c.b16 %v378, %v377
  %v392 = vpack.c.b16 %v380, %v379
  %v393 = vpack.c.b16 %v382, %v381
  %v394 = vpack.c.b16 %v384, %v383
  %v395 = vpack.c.b16 %v386, %v385
  %v396 = vpack.c.b16 %v388, %v387
  %405 = vmatpush.bf16.msra.mxu0 %v396
  %406 = vmatpush.bf16.msra.mxu0 %v395
  %407 = vmatpush.bf16.msra.mxu0 %v394
  %408 = vmatpush.bf16.msra.mxu0 %v393
  %409 = vmatpush.bf16.msra.mxu0 %v392
  %410 = vmatpush.bf16.msra.mxu0 %v391
  %411 = vmatpush.bf16.msra.mxu0 %v390
  %412 = vmatpush.bf16.msra.mxu0 %v389
  %413 = vmatmul.bf16.gmra.mxu0 %v259
  %v414 = vpop.f32.mrf.mxu0
  %v415 = vadd.f32 0.0, %v414
  %v416 = vpop.f32.mrf.mxu0
  %v417 = vadd.f32 0.0, %v416
  %418 = vdwg.mxu0
  %419 = vst [vmem:[#allocation3] sm:$0xff] %v415
  %420 = vst [vmem:[#allocation3 + $0x8] sm:$0xff] %v417
  %421 = vst [vmem:[%s8] sm:$0xff] 0.0
  %s422 = sld [smem:[#allocation5]]
  %s423 = scalar_lea.vmem [#allocation2], %s422
  %v424 = vld [vmem:[%s423] sm:$0x1]
  %s425 = sld [smem:[#allocation6]]
  %s426 = scalar_lea.vmem [#allocation3], %s425
  %v427 = vld [vmem:[%s426] sm:$0x1]
  %v428 = vadd.f32 %v424, %v427
  %429 = vst [vmem:[%s8] sm:$0x1] %v428
  %s430 = sld [smem:[#allocation5 + $0x1]]
  %s431 = scalar_lea.vmem [#allocation2], %s430
  %v432 = vld [vmem:[%s431] sm:$0x1]
  %s433 = sld [smem:[#allocation6 + $0x1]]
  %s434 = scalar_lea.vmem [#allocation3], %s433
  %v435 = vld [vmem:[%s434] sm:$0x1]
  %v436 = vadd.f32 %v432, %v435
  %437 = vst [vmem:[%s8 + $0x1] sm:$0x1] %v436
  %s438 = sld [smem:[#allocation5 + $0x2]]
  %s439 = scalar_lea.vmem [#allocation2], %s438
  %v440 = vld [vmem:[%s439] sm:$0x1]
  %s441 = sld [smem:[#allocation6 + $0x2]]
  %s442 = scalar_lea.vmem [#allocation3], %s441
  %v443 = vld [vmem:[%s442] sm:$0x1]
  %v444 = vadd.f32 %v440, %v443
  %445 = vst [vmem:[%s8 + $0x2] sm:$0x1] %v444
  %s446 = sld [smem:[#allocation5 + $0x3]]
  %s447 = scalar_lea.vmem [#allocation2], %s446
  %v448 = vld [vmem:[%s447] sm:$0x1]
  %s449 = sld [smem:[#allocation6 + $0x3]]
  %s450 = scalar_lea.vmem [#allocation3], %s449
  %v451 = vld [vmem:[%s450] sm:$0x1]
  %v452 = vadd.f32 %v448, %v451
  %453 = vst [vmem:[%s8 + $0x3] sm:$0x1] %v452
  %s454 = sld [smem:[#allocation5 + $0x4]]
  %s455 = scalar_lea.vmem [#allocation2], %s454
  %v456 = vld [vmem:[%s455] sm:$0x1]
  %s457 = sld [smem:[#allocation6 + $0x4]]
  %s458 = scalar_lea.vmem [#allocation3], %s457
  %v459 = vld [vmem:[%s458] sm:$0x1]
  %v460 = vadd.f32 %v456, %v459
  %461 = vst [vmem:[%s8 + $0x4] sm:$0x1] %v460
  %s462 = sld [smem:[#allocation5 + $0x5]]
  %s463 = scalar_lea.vmem [#allocation2], %s462
  %v464 = vld [vmem:[%s463] sm:$0x1]
  %s465 = sld [smem:[#allocation6 + $0x5]]
  %s466 = scalar_lea.vmem [#allocation3], %s465
  %v467 = vld [vmem:[%s466] sm:$0x1]
  %v468 = vadd.f32 %v464, %v467
  %469 = vst [vmem:[%s8 + $0x5] sm:$0x1] %v468
  %s470 = sld [smem:[#allocation5 + $0x6]]
  %s471 = scalar_lea.vmem [#allocation2], %s470
  %v472 = vld [vmem:[%s471] sm:$0x1]
  %s473 = sld [smem:[#allocation6 + $0x6]]
  %s474 = scalar_lea.vmem [#allocation3], %s473
  %v475 = vld [vmem:[%s474] sm:$0x1]
  %v476 = vadd.f32 %v472, %v475
  %477 = vst [vmem:[%s8 + $0x6] sm:$0x1] %v476
  %s478 = sld [smem:[#allocation5 + $0x7]]
  %s479 = scalar_lea.vmem [#allocation2], %s478
  %v480 = vld [vmem:[%s479] sm:$0x1]
  %s481 = sld [smem:[#allocation6 + $0x7]]
  %s482 = scalar_lea.vmem [#allocation3], %s481
  %v483 = vld [vmem:[%s482] sm:$0x1]
  %v484 = vadd.f32 %v480, %v483
  %485 = vst [vmem:[%s8 + $0x7] sm:$0x1] %v484
  %v486 = vld [vmem:[%s8] sm:$0xff]
  %v487 = vld [vmem:[%s7] sm:$0x1]
  %v489 = vperm.slane %v487, 0
  %v491 = vadd.f32 %v486, %v489
  %v492 = vmul.f32 %v491, 0.5
  %v493 = vtanh.pop %v492
  %v494 = vadd.f32 %v493, 1.0
  %v495 = vmul.f32 %v494, 0.5
  %496 = vst [vmem:[%s8] sm:$0xff] %v495
  // Predicated region
  $region26: #{node_conv_gnn_forward.1} parent=0 // pred_check
    _
  $region27: #{node_conv_gnn_forward.1} parent=0 // pred_check_branch
    %498 = sbr.rel (0) target = $region29
  $region28: #{node_conv_gnn_forward.1} parent=0 // pred_region
    _
  $region29: #{node_conv_gnn_forward.1} parent=0 // pred_fallthru
    _
  // Predicated region
  $region30: #{node_conv_gnn_forward.1} parent=0 // pred_check
    _
  $region31: #{node_conv_gnn_forward.1} parent=0 // pred_check_branch
    %500 = sbr.rel (0) target = $region33
  $region32: #{node_conv_gnn_forward.1} parent=0 // pred_region
    _
  $region33: #{node_conv_gnn_forward.1} parent=0 // pred_fallthru
    _

</llo_original>
